<compile_context>
chip_gen: v7x
topology: tpu7x:2x2x1
jax: 0.10.0
libtpu: 0.0.40
codegen_flags: <defaults>
</compile_context>

<pallas_src>
import functools

import jax
import jax.numpy as jnp
from jax.experimental import pallas as pl
from jax.experimental.pallas import tpu as pltpu

LANES = 128        # lane width
SUBLANES = 8       # f32 sublanes per vreg
CHUNK_ROWS = 256   # inner-loop chunk: 256 x 128 x 4B = 128 KiB f32 temporaries


def _round_up(x, m):
    return ((x + m - 1) // m) * m


def _hw_config():
    """(max_block_rows, max_splits, vmem_limit_bytes) per TPU generation."""
    kind = ""
    try:
        kind = jax.devices()[0].device_kind.lower()
    except Exception:
        pass
    if "v7" in kind:
        # 2 TCs, 64 MiB VMEM/TC, 3.2 TB/s HBM: big blocks + megacore split.
        return 8192, 2, 48 * 1024 * 1024
    if "v6" in kind:
        return 4096, 1, 64 * 1024 * 1024
    # v5e (16 MiB scoped default) or unknown: conservative.
    return 2048, 1, None


def _mse_sum_kernel(x_ref, t_ref, o_ref, *, rows, block_rows, chunk_rows,
                    blocks_per_split, num_splits):
    """Accumulates sum((x - t)^2) for one block into a resident (8,128) slab."""
    c = pl.program_id(0)   # megacore split (parallel)
    i = pl.program_id(1)   # reduction step within the split (arbitrary)

    @pl.when(i == 0)
    def _init():
        o_ref[...] = jnp.zeros_like(o_ref)

    n_chunks = block_rows // chunk_rows
    total_blocks = num_splits * blocks_per_split
    # Valid rows in the globally-last block (static Python int).
    rem_rows = rows - (total_blocks - 1) * block_rows

    def chunk_sq_sum(k, valid_rows=None):
        start = k * chunk_rows
        if not isinstance(start, int):
            start = pl.multiple_of(start, chunk_rows)
        xa = x_ref[pl.ds(start, chunk_rows), :].astype(jnp.float32)
        ta = t_ref[pl.ds(start, chunk_rows), :].astype(jnp.float32)
        d = xa - ta
        d2 = d * d
        if valid_rows is not None:
            # Ragged-block mask: select (not multiply) so garbage rows from the
            # partial DMA can never propagate NaN/Inf.
            row = jax.lax.broadcasted_iota(jnp.int32, (chunk_rows, LANES), 0)
            d2 = jnp.where(row < valid_rows, d2, 0.0)
        return d2.reshape(chunk_rows // SUBLANES, SUBLANES, LANES).sum(axis=0)

    def accumulate_full_block():
        # VPU-only accumulation straight into the resident output slab.
        o_ref[...] = jax.lax.fori_loop(
            0, n_chunks, lambda k, acc: acc + chunk_sq_sum(k), o_ref[...])

    if rem_rows == block_rows:
        # No ragged trailing block anywhere: every step takes the unmasked path.
        accumulate_full_block()
    else:
        is_last = jnp.logical_and(c == num_splits - 1, i == blocks_per_split - 1)

        @pl.when(jnp.logical_not(is_last))
        def _full():
            accumulate_full_block()

        @pl.when(is_last)
        def _ragged():
            # Only the one partially-valid chunk pays for the mask; chunks fully
            # past the array end are skipped outright.
            full_chunks = rem_rows // chunk_rows
            tail_valid = rem_rows - full_chunks * chunk_rows
            acc = o_ref[...]
            if full_chunks > 0:
                acc = jax.lax.fori_loop(
                    0, full_chunks, lambda k, a: a + chunk_sq_sum(k), acc)
            if tail_valid > 0:
                acc = acc + chunk_sq_sum(full_chunks, valid_rows=tail_valid)
            o_ref[...] = acc


def content_loss(x, target):
    """Equivalent of F.mse_loss(x, target) (mean reduction). Returns f32 scalar."""
    assert x.shape == target.shape, "input and target must match"
    n_elems = x.size

    xf = x.reshape(-1)
    tf = target.reshape(-1)

    n_main = (n_elems // LANES) * LANES
    rows = n_main // LANES

    total = jnp.float32(0.0)

    if rows > 0:
        # NOTE: for n_elems % 128 != 0 this slice may materialize an HBM copy of
        # both operands; for the aligned common case it lowers to a free bitcast.
        x2 = xf[:n_main].reshape(rows, LANES)
        t2 = tf[:n_main].reshape(rows, LANES)

        max_block_rows, max_splits, vmem_limit = _hw_config()

        if rows >= CHUNK_ROWS:
            block_rows = min(max_block_rows, _round_up(rows, CHUNK_ROWS))
            chunk_rows = CHUNK_ROWS
        else:
            block_rows = _round_up(rows, SUBLANES)
            chunk_rows = block_rows

        total_blocks = pl.cdiv(rows, block_rows)

        # Megacore split only when it is exact (no clamped duplicate block) and
        # only on multi-TC parts.
        if max_splits > 1 and total_blocks >= 2 and total_blocks % max_splits == 0:
            num_splits = max_splits
        else:
            num_splits = 1
        blocks_per_split = total_blocks // num_splits

        kernel = functools.partial(
            _mse_sum_kernel,
            rows=rows,
            block_rows=block_rows,
            chunk_rows=chunk_rows,
            blocks_per_split=blocks_per_split,
            num_splits=num_splits,
        )

        def in_map(c, i):
            return (c * blocks_per_split + i, 0)

        cp_kwargs = dict(dimension_semantics=("parallel", "arbitrary"))
        if vmem_limit is not None:
            cp_kwargs["vmem_limit_bytes"] = vmem_limit

        partials = pl.pallas_call(
            kernel,
            out_shape=jax.ShapeDtypeStruct((num_splits * SUBLANES, LANES),
                                           jnp.float32),
            grid_spec=pltpu.PrefetchScalarGridSpec(
                num_scalar_prefetch=0,
                grid=(num_splits, blocks_per_split),
                in_specs=[
                    pl.BlockSpec((block_rows, LANES), in_map),
                    pl.BlockSpec((block_rows, LANES), in_map),
                ],
                # Lane-dense output slab; resident across the reduction axis.
                out_specs=pl.BlockSpec((SUBLANES, LANES), lambda c, i: (c, 0)),
            ),
            compiler_params=pltpu.CompilerParams(**cp_kwargs),
            cost_estimate=pl.CostEstimate(
                flops=3 * n_main,
                transcendentals=0,
                bytes_accessed=n_main * (x.dtype.itemsize + target.dtype.itemsize)
                + num_splits * SUBLANES * LANES * 4,
            ),
        )(x2, t2)

        total = total + jnp.sum(partials)

    if n_main < n_elems:
        # Sub-128-element ragged tail (<=127 elems): plain-JAX reduce.
        dt = xf[n_main:].astype(jnp.float32) - tf[n_main:].astype(jnp.float32)
        total = total + jnp.sum(dt * dt)

    return total / jnp.float32(n_elems)


if __name__ == "__main__":
    key = jax.random.PRNGKey(0)
    k1, k2, k3, k4 = jax.random.split(key, 4)

    # Small NCHW activations, matching the ContentLoss forward usage.
    x = jax.random.normal(k1, (2, 4, 16, 16), dtype=jnp.float32)
    target = jax.random.normal(k2, (2, 4, 16, 16), dtype=jnp.float32)

    loss = content_loss(x, target)
    jax.block_until_ready(loss)
    ref = jnp.mean((x - target) ** 2)
    assert jnp.allclose(loss, ref, rtol=1e-5, atol=1e-6), (loss, ref)

    # Extra coverage: lane- and row-unaligned size exercises the masked path.
    xb = jax.random.normal(k3, (3, 5, 7, 11), dtype=jnp.float32)
    tb = jax.random.normal(k4, (3, 5, 7, 11), dtype=jnp.float32)
    loss_b = content_loss(xb, tb)
    jax.block_until_ready(loss_b)
    ref_b = jnp.mean((xb - tb) ** 2)
    assert jnp.allclose(loss_b, ref_b, rtol=1e-5, atol=1e-6), (loss_b, ref_b)

    print("KERNEL_OK")
</pallas_src>

<mosaic_0001>
module attributes {stable_mosaic.version = 11 : i64} {
  func.func @_mse_sum_kernel(%arg0: i32, %arg1: i32, %arg2: memref<16x128xf32, #tpu.memory_space<vmem>>, %arg3: memref<16x128xf32, #tpu.memory_space<vmem>>, %arg4: memref<8x128xf32, #tpu.memory_space<vmem>>) attributes {dimension_semantics = [#tpu.dimension_semantics<parallel>, #tpu.dimension_semantics<arbitrary>], iteration_bounds = array<i64: 1, 1>, scalar_prefetch = 0 : i64, scratch_operands = 0 : i64, tpu.core_type = #tpu.core_type<tc>, window_params = [{transform_indices = @transform_0, window_bounds = array<i64: 16, 128>}, {transform_indices = @transform_1, window_bounds = array<i64: 16, 128>}, {transform_indices = @transform_2, window_bounds = array<i64: 8, 128>}]} {
    %c0_i32 = arith.constant 0 : i32
    %0 = arith.cmpi eq, %arg1, %c0_i32 : i32
    %1 = arith.extui %0 : i1 to i32
    %c0_i32_0 = arith.constant 0 : i32
    %2 = arith.cmpi ne, %1, %c0_i32_0 : i32
    scf.if %2 {
      %cst_7 = arith.constant 0.000000e+00 : f32
      %16 = vector.broadcast %cst_7 : f32 to vector<8x128xf32>
      %c0_8 = arith.constant 0 : index
      %c0_9 = arith.constant 0 : index
      %17 = vector.load %arg4[%c0_8, %c0_9] : memref<8x128xf32, #tpu.memory_space<vmem>>, vector<8x128xf32>
      tpu.vector_store %arg4[%c0_8, %c0_9], %16 {strides = array<i32>} : memref<8x128xf32, #tpu.memory_space<vmem>>, vector<8x128xf32>,
    } else {
    }
    %c0 = arith.constant 0 : index
    %c0_1 = arith.constant 0 : index
    %3 = vector.load %arg4[%c0, %c0_1] : memref<8x128xf32, #tpu.memory_space<vmem>>, vector<8x128xf32>
    %c0_i32_2 = arith.constant 0 : i32
    %c16_i32 = arith.constant 16 : i32
    %4 = arith.muli %c0_i32_2, %c16_i32 : i32
    %5 = tpu.assume_multiple %4, 16 : i32
    %6 = arith.index_cast %5 : i32 to index
    %c0_3 = arith.constant 0 : index
    %7 = vector.load %arg2[%6, %c0_3] : memref<16x128xf32, #tpu.memory_space<vmem>>, vector<16x128xf32>
    %8 = arith.index_cast %5 : i32 to index
    %c0_4 = arith.constant 0 : index
    %9 = vector.load %arg3[%8, %c0_4] : memref<16x128xf32, #tpu.memory_space<vmem>>, vector<16x128xf32>
    %10 = arith.subf %7, %9 : vector<16x128xf32>
    %11 = arith.mulf %10, %10 : vector<16x128xf32>
    %12 = vector.shape_cast %11 : vector<16x128xf32> to vector<2x8x128xf32>
    %cst = arith.constant dense<0.000000e+00> : vector<8x128xf32>
    %13 = vector.multi_reduction <add>, %12, %cst [0] : vector<2x8x128xf32> to vector<8x128xf32>
    %14 = arith.addf %3, %13 : vector<8x128xf32>
    %c1_i32 = arith.constant 1 : i32
    %c0_5 = arith.constant 0 : index
    %c0_6 = arith.constant 0 : index
    %15 = vector.load %arg4[%c0_5, %c0_6] : memref<8x128xf32, #tpu.memory_space<vmem>>, vector<8x128xf32>
    tpu.vector_store %arg4[%c0_5, %c0_6], %14 {strides = array<i32>} : memref<8x128xf32, #tpu.memory_space<vmem>>, vector<8x128xf32>,
    return
  }
  func.func @transform_0(%arg0: i32, %arg1: i32) -> (i32, i32) {
    %c1_i32 = arith.constant 1 : i32
    %0 = arith.muli %arg0, %c1_i32 : i32
    %1 = arith.addi %0, %arg1 : i32
    %c0_i32 = arith.constant 0 : i32
    %c0_i32_0 = arith.constant 0 : i32
    return %1, %c0_i32 : i32, i32
  }
  func.func @transform_1(%arg0: i32, %arg1: i32) -> (i32, i32) {
    %c1_i32 = arith.constant 1 : i32
    %0 = arith.muli %arg0, %c1_i32 : i32
    %1 = arith.addi %0, %arg1 : i32
    %c0_i32 = arith.constant 0 : i32
    %c0_i32_0 = arith.constant 0 : i32
    return %1, %c0_i32 : i32, i32
  }
  func.func @transform_2(%arg0: i32, %arg1: i32) -> (i32, i32) {
    %c0_i32 = arith.constant 0 : i32
    %c0_i32_0 = arith.constant 0 : i32
    return %arg0, %c0_i32 : i32, i32
  }
}

</mosaic_0001>

<llo_original>
// kernel: tpu_custom_call.1
$region0: #{tpu_custom_call.1}
  #allocation0 [shape = 'u32[]', space=smem, size = 0x4, offset = 0x4, fixed_abs, tag = 'smem constant byte address 0x4 - core index']
  #allocation1 [shape = 'u32[144,128]{1,0:T(1,128)}', space=vmem, size = 0x12000, scoped, tag = 'internal scratch']
  %s0 = inlined_call_operand.hbm [shape: f32[16,128], index: 0, kind: input, shape index: {}]
  %s1 = inlined_call_operand.hbm [shape: f32[16,128], index: 1, kind: input, shape index: {}]
  %s2 = inlined_call_operand.hbm [shape: f32[8,128], index: 2, kind: output, shape index: {}]
  %s3 = sld [smem:[#allocation0]]
  $region30: #{tpu_custom_call.1} parent=0
    _
  %s5 = ssub.s32 1, %s3
  %s6 = scalar_select 0, %s5, %s3
  $region1: #{tpu_custom_call.1} parent=0
    #allocation2 [shape = 'u8[8192]{0}', space=vmem, size = 0x2000, scoped, tag = 'input window, operand 0, single buffered']
    #allocation3 [shape = 's32[1]{0}', space=sflag, size = 0x4, scoped, tag = 'scoped memory for tpu_custom_call.1']
    #allocation4 [shape = 's32[1]{0}', space=sflag, size = 0x4, scoped, tag = 'scoped memory for tpu_custom_call.1']
    #allocation5 [shape = 'u8[8192]{0}', space=vmem, size = 0x2000, scoped, tag = 'input window, operand 1, single buffered']
    #allocation6 [shape = 's32[1]{0}', space=sflag, size = 0x4, scoped, tag = 'scoped memory for tpu_custom_call.1']
    #allocation7 [shape = 'u8[4096]{0}', space=vmem, size = 0x1000, scoped, tag = 'output window, operand 0, single buffered']
    %7 = vsyncpa [#allocation3], 0
    %8 = vsyncpa [#allocation6], 0
    %9 = vsyncpa [#allocation4], 0
    // Predicated region
    $region2: #{tpu_custom_call.1} parent=1 // pred_check
      _
    $region3: #{tpu_custom_call.1} parent=1 // pred_check_branch
      %11 = sbr.rel (0) target = $region5
    $region4: #{tpu_custom_call.1} parent=1 // pred_region
      %s12 = sadd.s32 0, 0
      %s13 = smul.u32 2, %s12
      %s15 = ssub.s32 256, 256
      %16 = vsyncadd [#allocation3], %s15
      %s17 = smul.addr %s13, 128
      %s18 = scalar_lea.hbm %s0, %s17
      %s19 = sshll.u32 [#allocation2], 4
      %s20 = int_to_ptr.vmem [resolvable:$true] %s19
      %25 = dma.hbm_to_vmem [thread:$0]  %s18, 256, %s20, [#allocation3], 128, 128, 8
    $region5: #{tpu_custom_call.1} parent=1 // pred_fallthru
      _
    // Predicated region
    $region6: #{tpu_custom_call.1} parent=1 // pred_check
      _
    $region7: #{tpu_custom_call.1} parent=1 // pred_check_branch
      %27 = sbr.rel (0) target = $region9
    $region8: #{tpu_custom_call.1} parent=1 // pred_region
      %s28 = sadd.s32 0, 0
      %s29 = smul.u32 2, %s28
      %s31 = ssub.s32 256, 256
      %32 = vsyncadd [#allocation6], %s31
      %s33 = smul.addr %s29, 128
      %s34 = scalar_lea.hbm %s1, %s33
      %s35 = sshll.u32 [#allocation5], 4
      %s36 = int_to_ptr.vmem [resolvable:$true] %s35
      %41 = dma.hbm_to_vmem [thread:$0]  %s34, 256, %s36, [#allocation6], 128, 128, 8
    $region9: #{tpu_custom_call.1} parent=1 // pred_fallthru
      _
    // Predicated region
    $region10: #{tpu_custom_call.1} parent=1 // pred_check
      _
    $region11: #{tpu_custom_call.1} parent=1 // pred_check_branch
      %43 = sbr.rel (0) target = $region13
    $region12: #{tpu_custom_call.1} parent=1 // pred_region
      %44 = dma.done [#allocation3], 256
    $region13: #{tpu_custom_call.1} parent=1 // pred_fallthru
      _
    // Predicated region
    $region14: #{tpu_custom_call.1} parent=1 // pred_check
      _
    $region15: #{tpu_custom_call.1} parent=1 // pred_check_branch
      %46 = sbr.rel (0) target = $region17
    $region16: #{tpu_custom_call.1} parent=1 // pred_region
      %47 = dma.done [#allocation6], 256
    $region17: #{tpu_custom_call.1} parent=1 // pred_fallthru
      _
    %s48 = sadd.s32 0, 0
    %s49 = smul.u32 2, %s48
    %s50 = sadd.s32 0, 0
    %s51 = smul.u32 2, %s50
    %p52 = scmp.eq.s32.totalorder 0, 0
    // Predicated region
    $region18: #{tpu_custom_call.1} parent=1 // pred_check
      %p53 = pneg %p52
    $region19: #{tpu_custom_call.1} parent=1 // pred_check_branch
      %55 = sbr.rel (%p53) target = $region21
    $region20: #{tpu_custom_call.1} parent=1 // pred_region
      %56 = vst [vmem:[#allocation7] sm:$0xff] 0.0
    $region21: #{tpu_custom_call.1} parent=1 // pred_fallthru
      _
    %v57 = vld [vmem:[#allocation7] sm:$0xff]
    %v58 = vld [vmem:[#allocation2] sm:$0xff]
    %v59 = vld [vmem:[#allocation2 + $0x8] sm:$0xff]
    %v60 = vld [vmem:[#allocation5] sm:$0xff]
    %v61 = vld [vmem:[#allocation5 + $0x8] sm:$0xff]
    %v62 = vsub.f32 %v58, %v60
    %v63 = vsub.f32 %v59, %v61
    %v64 = vmul.f32 %v62, %v62
    %v65 = vmul.f32 %v63, %v63
    %v66 = vadd.f32 %v64, %v65
    %v67 = vadd.f32 %v57, %v66
    %68 = vst [vmem:[#allocation7] sm:$0xff] %v67
    // Predicated region
    $region22: #{tpu_custom_call.1} parent=1 // pred_check
      _
    $region23: #{tpu_custom_call.1} parent=1 // pred_check_branch
      %70 = sbr.rel (0) target = $region25
    $region24: #{tpu_custom_call.1} parent=1 // pred_region
      %s72 = ssub.s32 128, 128
      %73 = vsyncadd [#allocation4], %s72
      %s75 = sshll.u32 [#allocation7], 4
      %s76 = int_to_ptr.vmem [resolvable:$true] %s75
      %78 = dma.vmem_to_hbm [thread:$0]  %s76, 128, %s2, [#allocation4]
    $region25: #{tpu_custom_call.1} parent=1 // pred_fallthru
      _
    // Predicated region
    $region26: #{tpu_custom_call.1} parent=1 // pred_check
      _
    $region27: #{tpu_custom_call.1} parent=1 // pred_check_branch
      %80 = sbr.rel (0) target = $region29
    $region28: #{tpu_custom_call.1} parent=1 // pred_region
      %81 = dma.done [#allocation4], 128
    $region29: #{tpu_custom_call.1} parent=1 // pred_fallthru
      _
    %82 = vsyncpa [#allocation3], 1
    %83 = vsyncpa [#allocation6], 1
    %84 = vsyncpa [#allocation4], 1

</llo_original>
